<compile_context>
chip_gen: v6e
topology: v6e:2x2x1
jax: 0.10.0
libtpu: 0.0.40
codegen_flags: <defaults>
</compile_context>

<pallas_src>
import jax
import jax.numpy as jnp
from jax.experimental import pallas as pl
from jax.experimental.pallas import tpu as pltpu


def _cdiv(a, b):
    return (a + b - 1) // b


def _round_up(x, m):
    return _cdiv(x, m) * m


def _ensemble_linear_kernel(x_ref, w_ref, b_ref, out_ref):
    # x_ref:   (eb, tb, in_dim)  or (tb, in_dim) when x is shared across members
    # w_ref:   (eb, in_dim, tn)
    # b_ref:   (eb, 1, tn)
    # out_ref: (eb, tb, tn)
    # eb is a small compile-time constant (<= 8) -> static loop fully unrolls
    # into one long basic block; bias-add / stores overlap the next matmul.
    eb = w_ref.shape[0]
    x_shared = len(x_ref.shape) == 2
    x_tile = x_ref[...] if x_shared else None
    for e in range(eb):
        xe = x_tile if x_shared else x_ref[e]
        acc = jnp.dot(xe, w_ref[e], preferred_element_type=jnp.float32)
        out_ref[e] = (acc + b_ref[e]).astype(out_ref.dtype)


def _vmem_capacity_bytes():
    try:
        return int(pltpu.get_tpu_info().vmem_capacity_bytes)
    except Exception:
        return 64 * 1024 * 1024  # conservative: v7x per-TensorCore VMEM


def _choose_tn(out_p, cap=512):
    # Feature (lane) tile. If out_p is a multiple of 128 pick the largest
    # multiple-of-128 divisor <= cap (tn >= 256 when possible -> good
    # 256x256-MXU utilisation on v6e/v7x).  Ragged small out_dim stays as the
    # full dim: masked stores, but no wasted HBM write bytes.
    if out_p % 128 != 0:
        return out_p
    best, d = 128, 128
    while d <= min(out_p, cap):
        if out_p % d == 0:
            best = d
        d += 128
    return best


def _choose_eb(E, max_eb):
    # Largest divisor of E that fits the VMEM budget, keeps the static unroll
    # small, and leaves >= 2 grid steps along E (megacore split on v7x).
    if E == 1:
        return 1
    best = 1
    for d in range(1, min(E, max_eb) + 1):
        if E % d == 0 and E // d >= 2:
            best = d
    return best


def prepare_ensemble_linear_params(weight, bias=None, compute_dtype=None):
    """One-time parameter prep (hoisted out of the per-call hot path).

    * zero bias when the layer has none,
    * optional bf16 cast of the weight (f32 accumulation stays in the kernel),
    * lane padding of out_dim only for large ragged layers (rare).
    Returns (weight_p, bias_p, out_dim).
    """
    E, in_dim, out_dim = weight.shape
    if bias is None:
        bias = jnp.zeros((E, 1, out_dim), jnp.float32)
    bias = bias.astype(jnp.float32)  # bias is tiny: keep the add exact in f32
    if out_dim % 128 != 0 and out_dim > 1024:
        pad = _round_up(out_dim, 128) - out_dim
        weight = jnp.pad(weight, ((0, 0), (0, 0), (0, pad)))
        bias = jnp.pad(bias, ((0, 0), (0, 0), (0, pad)))
    if compute_dtype is not None:
        weight = weight.astype(compute_dtype)
    return weight, bias, out_dim


def ensemble_linear_forward(x, weight_p, bias_p, out_dim, *, batch_tile=512):
    """Pallas forward for EnsembleLinearLayer.

    x:        (E, B, in_dim) or (B, in_dim) (shared across the ensemble; the
              broadcast is expressed via the BlockSpec, never materialised).
    weight_p: (E, in_dim, out_p) from prepare_ensemble_linear_params
    bias_p:   (E, 1, out_p)
    returns   (E, B, out_dim) float32
    """
    E, in_dim, out_p = weight_p.shape

    x = x.astype(weight_p.dtype)  # bf16 opt-in follows the weight dtype
    x_shared = (x.ndim == 2)
    if x_shared:
        assert x.shape[1] == in_dim, x.shape
        B = x.shape[0]
    else:
        assert x.shape[0] == E and x.shape[2] == in_dim, x.shape
        B = x.shape[1]

    # ---- Feature (N) tiling.
    tn = _choose_tn(out_p)
    num_n = out_p // tn

    # ---- VMEM budget (v7x: 64 MiB/TC; v5e/v6e: 128 MiB).
    vmem_cap = _vmem_capacity_bytes()
    budget = vmem_cap // 2
    w_bytes_per_e = in_dim * tn * weight_p.dtype.itemsize  # single-buffered
    max_eb = max(1, min(8, budget // (2 * w_bytes_per_e)))
    eb = _choose_eb(E, max_eb)
    num_e = E // eb

    # ---- Batch tiling: balanced 8-aligned tiles, bounded by remaining VMEM.
    B_p = _round_up(B, 8)
    x_row = in_dim * x.dtype.itemsize * (1 if x_shared else eb) * 2  # 2 bufs
    o_row = eb * tn * 4 * 2                                          # 2 bufs
    remaining = max(budget - eb * w_bytes_per_e, 8 * (x_row + o_row))
    tb_cap = max(8, (remaining // (x_row + o_row)) // 8 * 8)
    bt = max(8, min(batch_tile, tb_cap))
    if num_e * num_n == 1 and B_p >= 16:
        # Guarantee >= 2 parallel grid steps so v7x's 2nd TensorCore is busy.
        bt = min(bt, _round_up(_cdiv(B_p, 2), 8))
    num_b = _cdiv(B_p, bt)
    tb = _round_up(_cdiv(B_p, num_b), 8)
    B_pad = tb * num_b

    if B_pad != B:
        if x_shared:
            x = jnp.pad(x, ((0, B_pad - B), (0, 0)))
        else:
            x = jnp.pad(x, ((0, 0), (0, B_pad - B), (0, 0)))

    # Grid order (ei, ni, bi): batch innermost so the large resident weight
    # block keeps a constant block index and is not re-DMA'd per batch tile.
    grid = (num_e, num_n, num_b)
    if x_shared:
        x_spec = pl.BlockSpec((tb, in_dim), lambda ei, ni, bi: (bi, 0))
    else:
        x_spec = pl.BlockSpec((eb, tb, in_dim), lambda ei, ni, bi: (ei, bi, 0))
    out_spec = pl.BlockSpec((eb, tb, tn), lambda ei, ni, bi: (ei, bi, ni))

    def _call(weight_pipeline_mode):
        wkw = ({} if weight_pipeline_mode is None
               else {"pipeline_mode": weight_pipeline_mode})
        grid_spec = pltpu.PrefetchScalarGridSpec(
            num_scalar_prefetch=0,
            grid=grid,
            in_specs=[
                x_spec,
                pl.BlockSpec((eb, in_dim, tn),
                             lambda ei, ni, bi: (ei, 0, ni), **wkw),
                pl.BlockSpec((eb, 1, tn),
                             lambda ei, ni, bi: (ei, 0, ni), **wkw),
            ],
            out_specs=out_spec,
        )
        return pl.pallas_call(
            _ensemble_linear_kernel,
            out_shape=jax.ShapeDtypeStruct((E, B_pad, out_p), jnp.float32),
            grid_spec=grid_spec,
            compiler_params=pltpu.CompilerParams(
                dimension_semantics=("parallel", "parallel", "parallel"),
                vmem_limit_bytes=int(vmem_cap * 3 // 4)),
        )(x, weight_p, bias_p)

    try:
        # Weight/bias block index only changes on the outer (ei, ni) axes ->
        # single-buffer them: halves the dominant VMEM footprint (v7x-critical).
        out = _call(pl.Buffered(1))
    except Exception:
        # TODO(synk): drop this fallback once pl.Buffered(1) is supported everywhere.
        out = _call(None)

    if B_pad != B or out_p != out_dim:
        out = out[:, :B, :out_dim]
    return out


def reference_forward(x, weight, bias):
    """Plain-JAX reference matching torch.matmul(x, weight) + bias."""
    if x.ndim == 2:
        out = jnp.einsum("bi,eio->ebo", x, weight)
    else:
        out = jnp.einsum("ebi,eio->ebo", x, weight)
    if bias is not None:
        out = out + bias
    return out


if __name__ == "__main__":
    # Small shapes consistent with the module.
    in_dim = 32
    out_dim = 32
    ensemble_size = 4
    batch = 8

    key = jax.random.PRNGKey(0)
    k_w, k_b, k_x, k_x2 = jax.random.split(key, 4)

    # Mirrors torch.rand (uniform [0, 1)) parameter init.
    weight = jax.random.uniform(
        k_w, (ensemble_size, in_dim, out_dim), dtype=jnp.float32)
    bias = jax.random.uniform(
        k_b, (ensemble_size, 1, out_dim), dtype=jnp.float32)

    # One-time parameter prep (hoisted out of the per-call hot path).
    w_p, b_p, odim = prepare_ensemble_linear_params(weight, bias)

    # Per-member input, the usual mbrl-lib usage: x is (E, B, in_dim).
    x = jax.random.normal(k_x, (ensemble_size, batch, in_dim),
                          dtype=jnp.float32)
    out = jax.block_until_ready(ensemble_linear_forward(x, w_p, b_p, odim))
    ref = reference_forward(x, weight, bias)
    assert out.shape == (ensemble_size, batch, out_dim), out.shape
    assert jnp.allclose(out, ref, atol=1e-4, rtol=1e-4), "mismatch (3-D x)"

    # Broadcast path: x is (B, in_dim), shared across the ensemble
    # (no broadcast_to / no E-fold x copy in HBM).
    x2 = jax.random.normal(k_x2, (batch, in_dim), dtype=jnp.float32)
    out2 = jax.block_until_ready(ensemble_linear_forward(x2, w_p, b_p, odim))
    ref2 = reference_forward(x2, weight, bias)
    assert out2.shape == (ensemble_size, batch, out_dim), out2.shape
    assert jnp.allclose(out2, ref2, atol=1e-4, rtol=1e-4), "mismatch (2-D x)"

    # bias=False path.
    w_nb, b_nb, odim_nb = prepare_ensemble_linear_params(weight, None)
    out3 = jax.block_until_ready(
        ensemble_linear_forward(x, w_nb, b_nb, odim_nb))
    ref3 = reference_forward(x, weight, None)
    assert jnp.allclose(out3, ref3, atol=1e-4, rtol=1e-4), "mismatch (no bias)"

    # Opt-in bf16 compute (halves weight/activation DMA; f32 accumulation).
    w_bf, b_bf, odim_bf = prepare_ensemble_linear_params(
        weight, bias, compute_dtype=jnp.bfloat16)
    out4 = jax.block_until_ready(
        ensemble_linear_forward(x, w_bf, b_bf, odim_bf))
    assert jnp.allclose(out4, ref, atol=5e-2, rtol=5e-2), "mismatch (bf16)"

    print("KERNEL_OK")
</pallas_src>

<mosaic_0001>
module attributes {stable_mosaic.version = 11 : i64} {
  func.func @_ensemble_linear_kernel(%arg0: i32, %arg1: i32, %arg2: i32, %arg3: memref<2x8x32xf32, #tpu.memory_space<vmem>>, %arg4: memref<2x32x32xf32, #tpu.memory_space<vmem>>, %arg5: memref<2x1x32xf32, #tpu.memory_space<vmem>>, %arg6: memref<2x8x32xf32, #tpu.memory_space<vmem>>) attributes {dimension_semantics = [#tpu.dimension_semantics<parallel>, #tpu.dimension_semantics<parallel>, #tpu.dimension_semantics<parallel>], iteration_bounds = array<i64: 2, 1, 1>, scalar_prefetch = 0 : i64, scratch_operands = 0 : i64, tpu.core_type = #tpu.core_type<tc>, window_params = [{transform_indices = @transform_0, window_bounds = array<i64: 2, 8, 32>}, {pipeline_mode = #tpu.pipeline_mode<synchronous>, transform_indices = @transform_1, window_bounds = array<i64: 2, 32, 32>}, {pipeline_mode = #tpu.pipeline_mode<synchronous>, transform_indices = @transform_2, window_bounds = array<i64: 2, 1, 32>}, {transform_indices = @transform_3, window_bounds = array<i64: 2, 8, 32>}]} {
    %c0 = arith.constant 0 : index
    %c0_0 = arith.constant 0 : index
    %c0_1 = arith.constant 0 : index
    %0 = vector.load %arg3[%c0, %c0_0, %c0_1] : memref<2x8x32xf32, #tpu.memory_space<vmem>>, vector<1x8x32xf32>
    %1 = vector.shape_cast %0 : vector<1x8x32xf32> to vector<8x32xf32>
    %c0_2 = arith.constant 0 : index
    %c0_3 = arith.constant 0 : index
    %c0_4 = arith.constant 0 : index
    %2 = vector.load %arg4[%c0_2, %c0_3, %c0_4] : memref<2x32x32xf32, #tpu.memory_space<vmem>>, vector<1x32x32xf32>
    %3 = vector.shape_cast %2 : vector<1x32x32xf32> to vector<32x32xf32>
    %cst = arith.constant dense<0.000000e+00> : vector<8x32xf32>
    %4 = tpu.matmul %1, %3, %cst {dimension_numbers = #tpu.dot_dimension_numbers<[1], [0], [0], [1], [0, 0, 1, 1], [], []>} : vector<8x32xf32>, vector<32x32xf32>, vector<8x32xf32> -> vector<8x32xf32>
    %c0_5 = arith.constant 0 : index
    %c0_6 = arith.constant 0 : index
    %c0_7 = arith.constant 0 : index
    %5 = vector.load %arg5[%c0_5, %c0_6, %c0_7] : memref<2x1x32xf32, #tpu.memory_space<vmem>>, vector<1x1x32xf32>
    %6 = vector.shape_cast %5 : vector<1x1x32xf32> to vector<1x32xf32>
    %7 = vector.broadcast %6 : vector<1x32xf32> to vector<8x32xf32>
    %8 = arith.addf %4, %7 : vector<8x32xf32>
    %c0_8 = arith.constant 0 : index
    %c0_9 = arith.constant 0 : index
    %c0_10 = arith.constant 0 : index
    %9 = vector.load %arg6[%c0_8, %c0_9, %c0_10] : memref<2x8x32xf32, #tpu.memory_space<vmem>>, vector<1x8x32xf32>
    %10 = vector.shape_cast %9 : vector<1x8x32xf32> to vector<8x32xf32>
    %11 = vector.shape_cast %8 : vector<8x32xf32> to vector<1x8x32xf32>
    tpu.vector_store %arg6[%c0_8, %c0_9, %c0_10], %11 {strides = array<i32>} : memref<2x8x32xf32, #tpu.memory_space<vmem>>, vector<1x8x32xf32>,
    %c1 = arith.constant 1 : index
    %c0_11 = arith.constant 0 : index
    %c0_12 = arith.constant 0 : index
    %12 = vector.load %arg3[%c1, %c0_11, %c0_12] : memref<2x8x32xf32, #tpu.memory_space<vmem>>, vector<1x8x32xf32>
    %13 = vector.shape_cast %12 : vector<1x8x32xf32> to vector<8x32xf32>
    %c1_13 = arith.constant 1 : index
    %c0_14 = arith.constant 0 : index
    %c0_15 = arith.constant 0 : index
    %14 = vector.load %arg4[%c1_13, %c0_14, %c0_15] : memref<2x32x32xf32, #tpu.memory_space<vmem>>, vector<1x32x32xf32>
    %15 = vector.shape_cast %14 : vector<1x32x32xf32> to vector<32x32xf32>
    %cst_16 = arith.constant dense<0.000000e+00> : vector<8x32xf32>
    %16 = tpu.matmul %13, %15, %cst_16 {dimension_numbers = #tpu.dot_dimension_numbers<[1], [0], [0], [1], [0, 0, 1, 1], [], []>} : vector<8x32xf32>, vector<32x32xf32>, vector<8x32xf32> -> vector<8x32xf32>
    %c1_17 = arith.constant 1 : index
    %c0_18 = arith.constant 0 : index
    %c0_19 = arith.constant 0 : index
    %17 = vector.load %arg5[%c1_17, %c0_18, %c0_19] : memref<2x1x32xf32, #tpu.memory_space<vmem>>, vector<1x1x32xf32>
    %18 = vector.shape_cast %17 : vector<1x1x32xf32> to vector<1x32xf32>
    %19 = vector.broadcast %18 : vector<1x32xf32> to vector<8x32xf32>
    %20 = arith.addf %16, %19 : vector<8x32xf32>
    %c1_20 = arith.constant 1 : index
    %c0_21 = arith.constant 0 : index
    %c0_22 = arith.constant 0 : index
    %21 = vector.load %arg6[%c1_20, %c0_21, %c0_22] : memref<2x8x32xf32, #tpu.memory_space<vmem>>, vector<1x8x32xf32>
    %22 = vector.shape_cast %21 : vector<1x8x32xf32> to vector<8x32xf32>
    %23 = vector.shape_cast %20 : vector<8x32xf32> to vector<1x8x32xf32>
    tpu.vector_store %arg6[%c1_20, %c0_21, %c0_22], %23 {strides = array<i32>} : memref<2x8x32xf32, #tpu.memory_space<vmem>>, vector<1x8x32xf32>,
    return
  }
  func.func @transform_0(%arg0: i32, %arg1: i32, %arg2: i32) -> (i32, i32, i32) {
    %c0_i32 = arith.constant 0 : i32
    %c0_i32_0 = arith.constant 0 : i32
    return %arg0, %arg2, %c0_i32 : i32, i32, i32
  }
  func.func @transform_1(%arg0: i32, %arg1: i32, %arg2: i32) -> (i32, i32, i32) {
    %c0_i32 = arith.constant 0 : i32
    %c0_i32_0 = arith.constant 0 : i32
    return %arg0, %c0_i32, %arg1 : i32, i32, i32
  }
  func.func @transform_2(%arg0: i32, %arg1: i32, %arg2: i32) -> (i32, i32, i32) {
    %c0_i32 = arith.constant 0 : i32
    %c0_i32_0 = arith.constant 0 : i32
    return %arg0, %c0_i32, %arg1 : i32, i32, i32
  }
  func.func @transform_3(%arg0: i32, %arg1: i32, %arg2: i32) -> (i32, i32, i32) {
    %c0_i32 = arith.constant 0 : i32
    return %arg0, %arg2, %arg1 : i32, i32, i32
  }
}

module attributes {stable_mosaic.version = 11 : i64} {
  func.func @_ensemble_linear_kernel(%arg0: i32, %arg1: i32, %arg2: i32, %arg3: memref<2x8x32xf32, #tpu.memory_space<vmem>>, %arg4: memref<2x32x32xf32, #tpu.memory_space<vmem>>, %arg5: memref<2x1x32xf32, #tpu.memory_space<vmem>>, %arg6: memref<2x8x32xf32, #tpu.memory_space<vmem>>) attributes {dimension_semantics = [#tpu.dimension_semantics<parallel>, #tpu.dimension_semantics<parallel>, #tpu.dimension_semantics<parallel>], iteration_bounds = array<i64: 2, 1, 1>, scalar_prefetch = 0 : i64, scratch_operands = 0 : i64, tpu.core_type = #tpu.core_type<tc>, window_params = [{transform_indices = @transform_0, window_bounds = array<i64: 2, 8, 32>}, {transform_indices = @transform_1, window_bounds = array<i64: 2, 32, 32>}, {transform_indices = @transform_2, window_bounds = array<i64: 2, 1, 32>}, {transform_indices = @transform_3, window_bounds = array<i64: 2, 8, 32>}]} {
    %c0 = arith.constant 0 : index
    %c0_0 = arith.constant 0 : index
    %c0_1 = arith.constant 0 : index
    %0 = vector.load %arg3[%c0, %c0_0, %c0_1] : memref<2x8x32xf32, #tpu.memory_space<vmem>>, vector<1x8x32xf32>
    %1 = vector.shape_cast %0 : vector<1x8x32xf32> to vector<8x32xf32>
    %c0_2 = arith.constant 0 : index
    %c0_3 = arith.constant 0 : index
    %c0_4 = arith.constant 0 : index
    %2 = vector.load %arg4[%c0_2, %c0_3, %c0_4] : memref<2x32x32xf32, #tpu.memory_space<vmem>>, vector<1x32x32xf32>
    %3 = vector.shape_cast %2 : vector<1x32x32xf32> to vector<32x32xf32>
    %cst = arith.constant dense<0.000000e+00> : vector<8x32xf32>
    %4 = tpu.matmul %1, %3, %cst {dimension_numbers = #tpu.dot_dimension_numbers<[1], [0], [0], [1], [0, 0, 1, 1], [], []>} : vector<8x32xf32>, vector<32x32xf32>, vector<8x32xf32> -> vector<8x32xf32>
    %c0_5 = arith.constant 0 : index
    %c0_6 = arith.constant 0 : index
    %c0_7 = arith.constant 0 : index
    %5 = vector.load %arg5[%c0_5, %c0_6, %c0_7] : memref<2x1x32xf32, #tpu.memory_space<vmem>>, vector<1x1x32xf32>
    %6 = vector.shape_cast %5 : vector<1x1x32xf32> to vector<1x32xf32>
    %7 = vector.broadcast %6 : vector<1x32xf32> to vector<8x32xf32>
    %8 = arith.addf %4, %7 : vector<8x32xf32>
    %c0_8 = arith.constant 0 : index
    %c0_9 = arith.constant 0 : index
    %c0_10 = arith.constant 0 : index
    %9 = vector.load %arg6[%c0_8, %c0_9, %c0_10] : memref<2x8x32xf32, #tpu.memory_space<vmem>>, vector<1x8x32xf32>
    %10 = vector.shape_cast %9 : vector<1x8x32xf32> to vector<8x32xf32>
    %11 = vector.shape_cast %8 : vector<8x32xf32> to vector<1x8x32xf32>
    tpu.vector_store %arg6[%c0_8, %c0_9, %c0_10], %11 {strides = array<i32>} : memref<2x8x32xf32, #tpu.memory_space<vmem>>, vector<1x8x32xf32>,
    %c1 = arith.constant 1 : index
    %c0_11 = arith.constant 0 : index
    %c0_12 = arith.constant 0 : index
    %12 = vector.load %arg3[%c1, %c0_11, %c0_12] : memref<2x8x32xf32, #tpu.memory_space<vmem>>, vector<1x8x32xf32>
    %13 = vector.shape_cast %12 : vector<1x8x32xf32> to vector<8x32xf32>
    %c1_13 = arith.constant 1 : index
    %c0_14 = arith.constant 0 : index
    %c0_15 = arith.constant 0 : index
    %14 = vector.load %arg4[%c1_13, %c0_14, %c0_15] : memref<2x32x32xf32, #tpu.memory_space<vmem>>, vector<1x32x32xf32>
    %15 = vector.shape_cast %14 : vector<1x32x32xf32> to vector<32x32xf32>
    %cst_16 = arith.constant dense<0.000000e+00> : vector<8x32xf32>
    %16 = tpu.matmul %13, %15, %cst_16 {dimension_numbers = #tpu.dot_dimension_numbers<[1], [0], [0], [1], [0, 0, 1, 1], [], []>} : vector<8x32xf32>, vector<32x32xf32>, vector<8x32xf32> -> vector<8x32xf32>
    %c1_17 = arith.constant 1 : index
    %c0_18 = arith.constant 0 : index
    %c0_19 = arith.constant 0 : index
    %17 = vector.load %arg5[%c1_17, %c0_18, %c0_19] : memref<2x1x32xf32, #tpu.memory_space<vmem>>, vector<1x1x32xf32>
    %18 = vector.shape_cast %17 : vector<1x1x32xf32> to vector<1x32xf32>
    %19 = vector.broadcast %18 : vector<1x32xf32> to vector<8x32xf32>
    %20 = arith.addf %16, %19 : vector<8x32xf32>
    %c1_20 = arith.constant 1 : index
    %c0_21 = arith.constant 0 : index
    %c0_22 = arith.constant 0 : index
    %21 = vector.load %arg6[%c1_20, %c0_21, %c0_22] : memref<2x8x32xf32, #tpu.memory_space<vmem>>, vector<1x8x32xf32>
    %22 = vector.shape_cast %21 : vector<1x8x32xf32> to vector<8x32xf32>
    %23 = vector.shape_cast %20 : vector<8x32xf32> to vector<1x8x32xf32>
    tpu.vector_store %arg6[%c1_20, %c0_21, %c0_22], %23 {strides = array<i32>} : memref<2x8x32xf32, #tpu.memory_space<vmem>>, vector<1x8x32xf32>,
    return
  }
  func.func @transform_0(%arg0: i32, %arg1: i32, %arg2: i32) -> (i32, i32, i32) {
    %c0_i32 = arith.constant 0 : i32
    %c0_i32_0 = arith.constant 0 : i32
    return %arg0, %arg2, %c0_i32 : i32, i32, i32
  }
  func.func @transform_1(%arg0: i32, %arg1: i32, %arg2: i32) -> (i32, i32, i32) {
    %c0_i32 = arith.constant 0 : i32
    %c0_i32_0 = arith.constant 0 : i32
    return %arg0, %c0_i32, %arg1 : i32, i32, i32
  }
  func.func @transform_2(%arg0: i32, %arg1: i32, %arg2: i32) -> (i32, i32, i32) {
    %c0_i32 = arith.constant 0 : i32
    %c0_i32_0 = arith.constant 0 : i32
    return %arg0, %c0_i32, %arg1 : i32, i32, i32
  }
  func.func @transform_3(%arg0: i32, %arg1: i32, %arg2: i32) -> (i32, i32, i32) {
    %c0_i32 = arith.constant 0 : i32
    return %arg0, %arg2, %arg1 : i32, i32, i32
  }
}

</mosaic_0001>

<llo_original>
// kernel: tpu_custom_call.1
$region0: #{tpu_custom_call.1}
  #allocation0 [shape = 'u32[]', space=smem, size = 0x4, offset = 0x4, fixed_abs, tag = 'smem constant byte address 0x4 - core index']
  #allocation1 [shape = 'u32[144,128]{1,0:T(1,128)}', space=vmem, size = 0x12000, scoped, tag = 'internal scratch']
  %s0 = inlined_call_operand.hbm [shape: f32[4,8,32], index: 0, kind: input, shape index: {}]
  %s1 = inlined_call_operand.hbm [shape: f32[4,32,32], index: 1, kind: input, shape index: {}]
  %s2 = inlined_call_operand.hbm [shape: f32[4,1,32], index: 2, kind: input, shape index: {}]
  %s3 = inlined_call_operand.hbm [shape: f32[4,8,32], index: 3, kind: output, shape index: {}]
  %s4 = sld [smem:[#allocation0]]
  $region57: #{tpu_custom_call.1} parent=0
    _
  %s6 = ssub.s32 1, %s4
  %s7 = scalar_select 0, %s6, %s4
  $region1: #{tpu_custom_call.1} parent=0
    #allocation2 [shape = 'u8[16384]{0}', space=vmem, size = 0x4000, scoped, tag = 'input window, operand 0']
    #allocation3 [shape = 's32[2]{0}', space=sflag, size = 0x8, scoped, tag = 'scoped memory for tpu_custom_call.1']
    #allocation4 [shape = 's32[2]{0}', space=sflag, size = 0x8, scoped, tag = 'scoped memory for tpu_custom_call.1']
    #allocation5 [shape = 'u8[32768]{0}', space=vmem, size = 0x8000, scoped, tag = 'input window, operand 1, single buffered']
    #allocation6 [shape = 's32[1]{0}', space=sflag, size = 0x4, scoped, tag = 'scoped memory for tpu_custom_call.1']
    #allocation7 [shape = 'u8[1024]{0}', space=vmem, size = 0x400, scoped, tag = 'input window, operand 2, single buffered']
    #allocation8 [shape = 'u8[16384]{0}', space=vmem, size = 0x4000, scoped, tag = 'output window, operand 0']
    %8 = vsyncpa [#allocation3], 0
    %s9 = scalar_lea.sflag [#allocation3], 1
    %10 = vsyncpa %s9, 0
    %11 = vsyncpa [#allocation6], 0
    %12 = vsyncpa [#allocation4], 0
    %s13 = scalar_lea.sflag [#allocation4], 1
    %14 = vsyncpa %s13, 0
    loop: start=0, step=1, limit=4
    $region2: #{tpu_custom_call.1} parent=1 // loop_pre_header
      _
    $region3: #{tpu_custom_call.1} parent=1 // loop_header
      %s16 = sphi 0, %s20
      %p17 = scmp.ge.s32.totalorder %s16, 4
      %s23 = sphi 0, %s42
      %s24 = sphi 0, %s38
      %s25 = sphi 0, %s34
      %s26 = sphi 0, %s23
      %s27 = sphi 0, %s24
      %s28 = sphi 0, %s25
      %s29 = sphi 0, %s26
      %s30 = sphi 0, %s27
      %s31 = sphi 0, %s28
      %s47 = sphi 0, %s49
      %s50 = sphi 0, %s47
      %s51 = sphi 0, %s50
      %s67 = sphi 0, %s51
      %s75 = sphi 0, %s77
      %s78 = sphi 0, %s75
      %s79 = sphi 0, %s78
      %s95 = sphi 0, %s79
      %s103 = sphi 0, %s105
      %s106 = sphi 0, %s103
      %s107 = sphi 0, %s106
      %s123 = sphi 0, %s107
      %s133 = sphi 0, %s135
      %s136 = sphi 0, %s133
      %s137 = sphi 0, %s136
      %s153 = sphi 0, %s137
    $region4: #{tpu_custom_call.1} parent=1 // loop_header_branch
      %19 = sbr.rel (%p17) target = $region8
    $region5: #{tpu_custom_call.1} parent=1 // loop_body
      %s21 = ssub.s32 %s16, 1
      %s22 = ssub.s32 %s16, 2
      %s32 = sadd.s32 1, %s25
      %p33 = scmp.ge.s32.totalorder %s32, 1
      %s34 = scalar_select %p33, 0, %s32
      %s35 = sadd.s32 1, %s24
      %s36 = scalar_select %p33, %s35, %s24
      %p37 = scmp.ge.s32.totalorder %s36, 1
      %s38 = scalar_select %p37, 0, %s36
      %s39 = sadd.s32 1, %s23
      %s40 = scalar_select %p37, %s39, %s23
      %p41 = scmp.ge.s32.totalorder %s40, 2
      %s42 = scalar_select %p41, 0, %s40
      %s43 = ssub.s32 %s23, %s42
      %s44 = ssub.s32 %s25, %s34
      %s45 = sor.u32 %s43, %s44
      %p46 = scmp.eq.s32.totalorder %s45, 0
      %s48 = sadd.s32 %s47, 1
      %s49 = scalar_select %p46, %s47, %s48
      %p52 = pneg %p46
      %p53 = scmp.eq.s32.totalorder %s16, 1
      %p54 = por %p52, %p53
      %p55 = scmp.ne.s32.totalorder %s47, %s50
      %p56 = scmp.eq.s32.totalorder %s16, 0
      %p57 = por %p55, %p56
      %p58 = scmp.ne.s32.totalorder %s47, %s50
      %p59 = scmp.eq.s32.totalorder %s21, 1
      %p60 = por %p58, %p59
      %p61 = scmp.ne.s32.totalorder %s50, %s51
      %p62 = scmp.eq.s32.totalorder %s21, 0
      %p63 = por %p61, %p62
      %p64 = scmp.ne.s32.totalorder %s50, %s51
      %p65 = scmp.eq.s32.totalorder %s22, 1
      %p66 = por %p64, %p65
      %p68 = scmp.ne.s32.totalorder %s51, %s67
      %p69 = scmp.eq.s32.totalorder %s22, 0
      %p70 = por %p68, %p69
      %s71 = ssub.s32 %s23, %s42
      %s72 = ssub.s32 %s24, %s38
      %s73 = sor.u32 %s71, %s72
      %p74 = scmp.eq.s32.totalorder %s73, 0
      %s76 = sadd.s32 %s75, 1
      %s77 = scalar_select %p74, %s75, %s76
      %p80 = pneg %p74
      %p81 = scmp.eq.s32.totalorder %s16, 1
      %p82 = por %p80, %p81
      %p83 = scmp.ne.s32.totalorder %s75, %s78
      %p84 = scmp.eq.s32.totalorder %s16, 0
      %p85 = por %p83, %p84
      %p86 = scmp.ne.s32.totalorder %s75, %s78
      %p87 = scmp.eq.s32.totalorder %s21, 1
      %p88 = por %p86, %p87
      %p89 = scmp.ne.s32.totalorder %s78, %s79
      %p90 = scmp.eq.s32.totalorder %s21, 0
      %p91 = por %p89, %p90
      %p92 = scmp.ne.s32.totalorder %s78, %s79
      %p93 = scmp.eq.s32.totalorder %s22, 1
      %p94 = por %p92, %p93
      %p96 = scmp.ne.s32.totalorder %s79, %s95
      %p97 = scmp.eq.s32.totalorder %s22, 0
      %p98 = por %p96, %p97
      %s99 = ssub.s32 %s23, %s42
      %s100 = ssub.s32 %s24, %s38
      %s101 = sor.u32 %s99, %s100
      %p102 = scmp.eq.s32.totalorder %s101, 0
      %s104 = sadd.s32 %s103, 1
      %s105 = scalar_select %p102, %s103, %s104
      %p108 = pneg %p102
      %p109 = scmp.eq.s32.totalorder %s16, 1
      %p110 = por %p108, %p109
      %p111 = scmp.ne.s32.totalorder %s103, %s106
      %p112 = scmp.eq.s32.totalorder %s16, 0
      %p113 = por %p111, %p112
      %p114 = scmp.ne.s32.totalorder %s103, %s106
      %p115 = scmp.eq.s32.totalorder %s21, 1
      %p116 = por %p114, %p115
      %p117 = scmp.ne.s32.totalorder %s106, %s107
      %p118 = scmp.eq.s32.totalorder %s21, 0
      %p119 = por %p117, %p118
      %p120 = scmp.ne.s32.totalorder %s106, %s107
      %p121 = scmp.eq.s32.totalorder %s22, 1
      %p122 = por %p120, %p121
      %p124 = scmp.ne.s32.totalorder %s107, %s123
      %p125 = scmp.eq.s32.totalorder %s22, 0
      %p126 = por %p124, %p125
      %s127 = ssub.s32 %s23, %s42
      %s128 = ssub.s32 %s25, %s34
      %s129 = sor.u32 %s127, %s128
      %s130 = ssub.s32 %s24, %s38
      %s131 = sor.u32 %s129, %s130
      %p132 = scmp.eq.s32.totalorder %s131, 0
      %s134 = sadd.s32 %s133, 1
      %s135 = scalar_select %p132, %s133, %s134
      %p138 = pneg %p132
      %p139 = scmp.eq.s32.totalorder %s16, 1
      %p140 = por %p138, %p139
      %p141 = scmp.ne.s32.totalorder %s133, %s136
      %p142 = scmp.eq.s32.totalorder %s16, 0
      %p143 = por %p141, %p142
      %p144 = scmp.ne.s32.totalorder %s133, %s136
      %p145 = scmp.eq.s32.totalorder %s21, 1
      %p146 = por %p144, %p145
      %p147 = scmp.ne.s32.totalorder %s136, %s137
      %p148 = scmp.eq.s32.totalorder %s21, 0
      %p149 = por %p147, %p148
      %p150 = scmp.ne.s32.totalorder %s136, %s137
      %p151 = scmp.eq.s32.totalorder %s22, 1
      %p152 = por %p150, %p151
      %p154 = scmp.ne.s32.totalorder %s137, %s153
      %p155 = scmp.eq.s32.totalorder %s22, 0
      %p156 = por %p154, %p155
      %p157 = scmp.le.s32.totalorder 1, %s16
      %p158 = scmp.lt.s32.totalorder %s16, 3
      %p159 = pnand %p157, %p158
      %p160 = pneg %p159
      // Predicated region
      $region9: #{tpu_custom_call.1} parent=5 // pred_check
        _
      $region10: #{tpu_custom_call.1} parent=5 // pred_check_branch
        %162 = sbr.rel (%p159) target = $region12
      $region11: #{tpu_custom_call.1} parent=5 // pred_region
        %s163 = ssub.s32 %s16, 1
        // Predicated region
        $region13: #{tpu_custom_call.1} parent=11 // pred_check
          %p164 = pneg %p91
        $region14: #{tpu_custom_call.1} parent=11 // pred_check_branch
          %166 = sbr.rel (%p164) target = $region16
        $region15: #{tpu_custom_call.1} parent=11 // pred_region
          %s167 = smul.u32 2, %s26
          %s169 = ssub.s32 1024, 1024
          %170 = vsyncadd [#allocation6], %s169
          %s171 = smul.addr %s167, 4
          %s172 = sadd.s32 %s27, %s171
          %s173 = smul.addr %s172, 128
          %s174 = scalar_lea.hbm %s1, %s173
          %s175 = sshll.u32 [#allocation5], 4
          %s176 = int_to_ptr.vmem [resolvable:$true] %s175
          %181 = dma.hbm_to_vmem [thread:$0]  %s174, 1024, %s176, [#allocation6], 128, 128, 8
        $region16: #{tpu_custom_call.1} parent=11 // pred_fallthru
          _
        // Predicated region
        $region17: #{tpu_custom_call.1} parent=11 // pred_check
          %p182 = pneg %p119
        $region18: #{tpu_custom_call.1} parent=11 // pred_check_branch
          %184 = sbr.rel (%p182) target = $region20
        $region19: #{tpu_custom_call.1} parent=11 // pred_region
          %s185 = smul.u32 2, %s26
          %s187 = ssub.s32 32, 32
          %188 = vsyncadd [#allocation6], %s187
          %s189 = sadd.s32 %s27, %s185
          %s190 = smul.addr %s189, 16
          %s191 = scalar_lea.hbm %s2, %s190
          %s192 = sshll.u32 [#allocation7], 4
          %s193 = int_to_ptr.vmem [resolvable:$true] %s192
          %198 = dma.hbm_to_vmem [thread:$0]  %s191, 32, %s193, [#allocation6], 16, 16, 1
        $region20: #{tpu_custom_call.1} parent=11 // pred_fallthru
          _
      $region12: #{tpu_custom_call.1} parent=5 // pred_fallthru
        _
      %p199 = scmp.lt.s32.totalorder %s16, 2
      // Predicated region
      $region21: #{tpu_custom_call.1} parent=5 // pred_check
        %p200 = pneg %p199
      $region22: #{tpu_custom_call.1} parent=5 // pred_check_branch
        %202 = sbr.rel (%p200) target = $region24
      $region23: #{tpu_custom_call.1} parent=5 // pred_region
        // Predicated region
        $region25: #{tpu_custom_call.1} parent=23 // pred_check
          %p203 = pneg %p57
        $region26: #{tpu_custom_call.1} parent=23 // pred_check_branch
          %205 = sbr.rel (%p203) target = $region28
        $region27: #{tpu_custom_call.1} parent=23 // pred_region
          %s206 = sand.u32 %s47, 1
          %s207 = scalar_lea.sflag [#allocation3], %s206
          %s208 = sand.u32 %s47, 1
          %s209 = smul.addr %s208, 16
          %s210 = scalar_lea.vmem [#allocation2], %s209
          %s211 = smul.u32 2, %s23
          %s213 = ssub.s32 256, 256
          %214 = vsyncadd %s207, %s213
          %s215 = sadd.s32 %s25, %s211
          %s216 = smul.addr %s215, 128
          %s217 = scalar_lea.hbm %s0, %s216
          %s218 = sshll.u32 %s210, 4
          %s219 = int_to_ptr.vmem [resolvable:$true] %s218
          %224 = dma.hbm_to_vmem [thread:$0]  %s217, 256, %s219, %s207, 128, 128, 8
        $region28: #{tpu_custom_call.1} parent=23 // pred_fallthru
          _
      $region24: #{tpu_custom_call.1} parent=5 // pred_fallthru
        _
      %p225 = scmp.le.s32.totalorder 1, %s16
      %p226 = scmp.lt.s32.totalorder %s16, 3
      %p227 = pnand %p225, %p226
      %p228 = pneg %p227
      // Predicated region
      $region29: #{tpu_custom_call.1} parent=5 // pred_check
        _
      $region30: #{tpu_custom_call.1} parent=5 // pred_check_branch
        %230 = sbr.rel (%p227) target = $region32
      $region31: #{tpu_custom_call.1} parent=5 // pred_region
        %s231 = ssub.s32 %s16, 1
        %s232 = sand.u32 %s50, 1
        %s233 = scalar_lea.sflag [#allocation3], %s232
        %s234 = sand.u32 %s50, 1
        %s235 = smul.addr %s234, 16
        %s236 = scalar_lea.vmem [#allocation2], %s235
        // Predicated region
        $region33: #{tpu_custom_call.1} parent=31 // pred_check
          %p237 = pneg %p63
        $region34: #{tpu_custom_call.1} parent=31 // pred_check_branch
          %239 = sbr.rel (%p237) target = $region36
        $region35: #{tpu_custom_call.1} parent=31 // pred_region
          %240 = dma.done %s233, 256
        $region36: #{tpu_custom_call.1} parent=31 // pred_fallthru
          _
        // Predicated region
        $region37: #{tpu_custom_call.1} parent=31 // pred_check
          %p241 = pneg %p91
        $region38: #{tpu_custom_call.1} parent=31 // pred_check_branch
          %243 = sbr.rel (%p241) target = $region40
        $region39: #{tpu_custom_call.1} parent=31 // pred_region
          %244 = dma.done [#allocation6], 1024
        $region40: #{tpu_custom_call.1} parent=31 // pred_fallthru
          _
        // Predicated region
        $region41: #{tpu_custom_call.1} parent=31 // pred_check
          %p245 = pneg %p119
        $region42: #{tpu_custom_call.1} parent=31 // pred_check_branch
          %247 = sbr.rel (%p245) target = $region44
        $region43: #{tpu_custom_call.1} parent=31 // pred_region
          %248 = dma.done [#allocation6], 32
        $region44: #{tpu_custom_call.1} parent=31 // pred_fallthru
          _
        %s249 = sand.u32 %s50, 1
        %s250 = scalar_lea.sflag [#allocation3], %s249
        %s251 = sand.u32 %s50, 1
        %s252 = smul.addr %s251, 16
        %s253 = scalar_lea.vmem [#allocation2], %s252
        %p254 = pneg %p63
        %p255 = pneg %p60
        %p256 = pneg %p91
        %p257 = pneg %p88
        %p258 = pneg %p119
        %p259 = pneg %p116
        %p260 = pneg %p149
        %p261 = pneg %p146
        %s262 = sand.u32 %s136, 1
        %s263 = scalar_lea.sflag [#allocation4], %s262
        %s264 = sand.u32 %s136, 1
        %s265 = smul.addr %s264, 16
        %s266 = scalar_lea.vmem [#allocation8], %s265
        %s267 = smul.u32 2, %s26
        %s268 = smul.u32 2, %s26
        %s269 = smul.u32 2, %s26
        %s270 = smul.u32 2, %s26
        %v271 = vld [vmem:[%s236] sm:$0xff]
        %v272 = vld [vmem:[#allocation5] sm:$0xff]
        %v273 = vld [vmem:[#allocation5 + $0x8] sm:$0xff]
        %v274 = vld [vmem:[#allocation5 + $0x10] sm:$0xff]
        %v275 = vld [vmem:[#allocation5 + $0x18] sm:$0xff]
        %v276 = vld [vmem:[#allocation7] sm:$0x1]
        %v278 = vlaneseq
        %v279 = vshrl.u32 %v278, 7
        %v280 = vsub.s32 0, %v279
        %v281 = vrot.slane %v276, %v280
        %vm283 = vcmask 261120
        %v285 = vsel %vm283, %v271, 0
        %287 = vmatprep.subr.mxu0 0.0
        %288 = vmatpush1.msra.mxu0 0.0
        %289 = vmatprep.subr.mxu0 0.0
        %290 = vmatpush1.msra.mxu0 0.0
        %291 = vmatprep.subr.mxu0 0.0
        %292 = vmatpush1.msra.mxu0 0.0
        %293 = vmatprep.subr.mxu0 0.0
        %294 = vmatpush1.msra.mxu0 0.0
        %295 = vmatprep.subr.mxu0 0.0
        %296 = vmatpush1.msra.mxu0 0.0
        %297 = vmatprep.subr.mxu0 0.0
        %298 = vmatpush1.msra.mxu0 0.0
        %299 = vmatprep.subr.mxu0 0.0
        %300 = vmatpush1.msra.mxu0 0.0
        %301 = vmatprep.subr.mxu0 0.0
        %302 = vmatpush1.msra.mxu0 0.0
        %303 = vmatprep.subr.mxu0 0.0
        %304 = vmatpush1.msra.mxu0 0.0
        %305 = vmatprep.subr.mxu0 0.0
        %306 = vmatpush1.msra.mxu0 0.0
        %307 = vmatprep.subr.mxu0 0.0
        %308 = vmatpush1.msra.mxu0 0.0
        %309 = vmatprep.subr.mxu0 0.0
        %310 = vmatpush1.msra.mxu0 0.0
        %311 = vmatprep.subr.mxu0 0.0
        %312 = vmatpush1.msra.mxu0 %v275
        %313 = vmatprep.subr.mxu0 0.0
        %314 = vmatpush1.msra.mxu0 %v274
        %315 = vmatprep.subr.mxu0 0.0
        %316 = vmatpush1.msra.mxu0 %v273
        %317 = vmatprep.subr.mxu0 0.0
        %318 = vmatpush1.msra.mxu0 %v272
        %319 = vmatprep.subr.mxu0 0.0
        %320 = vmatpush2.msra.mxu0 0.0
        %321 = vmatprep.subr.mxu0 0.0
        %322 = vmatpush2.msra.mxu0 0.0
        %323 = vmatprep.subr.mxu0 0.0
        %324 = vmatpush2.msra.mxu0 0.0
        %325 = vmatprep.subr.mxu0 0.0
        %326 = vmatpush2.msra.mxu0 0.0
        %327 = vmatprep.subr.mxu0 0.0
        %328 = vmatpush2.msra.mxu0 0.0
        %329 = vmatprep.subr.mxu0 0.0
        %330 = vmatpush2.msra.mxu0 0.0
        %331 = vmatprep.subr.mxu0 0.0
        %332 = vmatpush2.msra.mxu0 0.0
        %333 = vmatprep.subr.mxu0 0.0
        %334 = vmatpush2.msra.mxu0 0.0
        %335 = vmatprep.subr.mxu0 0.0
        %336 = vmatpush2.msra.mxu0 0.0
        %337 = vmatprep.subr.mxu0 0.0
        %338 = vmatpush2.msra.mxu0 0.0
        %339 = vmatprep.subr.mxu0 0.0
        %340 = vmatpush2.msra.mxu0 0.0
        %341 = vmatprep.subr.mxu0 0.0
        %342 = vmatpush2.msra.mxu0 0.0
        %343 = vmatprep.subr.mxu0 0.0
        %344 = vmatpush2.msra.mxu0 0.0
        %345 = vmatprep.subr.mxu0 0.0
        %346 = vmatpush2.msra.mxu0 0.0
        %347 = vmatprep.subr.mxu0 0.0
        %348 = vmatpush2.msra.mxu0 0.0
        %349 = vmatprep.subr.mxu0 0.0
        %350 = vmatpush2.msra.mxu0 0.0
        %351 = vmatprep.mubr.f32.mxu0 0.0
        %352 = vmatmul.mubr.f32.gmra.mxu0 %v285
        %v353 = vpop.f32.mrf.mxu0
        %v354 = vadd.f32 %v281, %v353
        %v355 = vpop.f32.mrf.mxu0
        %356 = vdwg.mxu0
        %357 = vst.msk [vmem:[%s266] sm:$0xff] %vm283, %v354
        %s358 = scalar_lea.vmem %s236, 8 [#allocation2]
        %v359 = vld [vmem:[%s358] sm:$0xff]
        %s360 = scalar_lea.vmem [#allocation5], 32
        %v361 = vld [vmem:[%s360] sm:$0xff]
        %v362 = vld [vmem:[%s360 + $0x8] sm:$0xff]
        %v363 = vld [vmem:[%s360 + $0x10] sm:$0xff]
        %v364 = vld [vmem:[%s360 + $0x18] sm:$0xff]
        %s365 = scalar_lea.vmem [#allocation7], 1
        %v366 = vld [vmem:[%s365] sm:$0x1]
        %v368 = vlaneseq
        %v369 = vshrl.u32 %v368, 7
        %v370 = vsub.s32 0, %v369
        %v371 = vrot.slane %v366, %v370
        %v374 = vsel %vm283, %v359, 0
        %376 = vmatprep.subr.mxu0 0.0
        %377 = vmatpush1.msra.mxu0 0.0
        %378 = vmatprep.subr.mxu0 0.0
        %379 = vmatpush1.msra.mxu0 0.0
        %380 = vmatprep.subr.mxu0 0.0
        %381 = vmatpush1.msra.mxu0 0.0
        %382 = vmatprep.subr.mxu0 0.0
        %383 = vmatpush1.msra.mxu0 0.0
        %384 = vmatprep.subr.mxu0 0.0
        %385 = vmatpush1.msra.mxu0 0.0
        %386 = vmatprep.subr.mxu0 0.0
        %387 = vmatpush1.msra.mxu0 0.0
        %388 = vmatprep.subr.mxu0 0.0
        %389 = vmatpush1.msra.mxu0 0.0
        %390 = vmatprep.subr.mxu0 0.0
        %391 = vmatpush1.msra.mxu0 0.0
        %392 = vmatprep.subr.mxu0 0.0
        %393 = vmatpush1.msra.mxu0 0.0
        %394 = vmatprep.subr.mxu0 0.0
        %395 = vmatpush1.msra.mxu0 0.0
        %396 = vmatprep.subr.mxu0 0.0
        %397 = vmatpush1.msra.mxu0 0.0
        %398 = vmatprep.subr.mxu0 0.0
        %399 = vmatpush1.msra.mxu0 0.0
        %400 = vmatprep.subr.mxu0 0.0
        %401 = vmatpush1.msra.mxu0 %v364
        %402 = vmatprep.subr.mxu0 0.0
        %403 = vmatpush1.msra.mxu0 %v363
        %404 = vmatprep.subr.mxu0 0.0
        %405 = vmatpush1.msra.mxu0 %v362
        %406 = vmatprep.subr.mxu0 0.0
        %407 = vmatpush1.msra.mxu0 %v361
        %408 = vmatprep.subr.mxu0 0.0
        %409 = vmatpush2.msra.mxu0 0.0
        %410 = vmatprep.subr.mxu0 0.0
        %411 = vmatpush2.msra.mxu0 0.0
        %412 = vmatprep.subr.mxu0 0.0
        %413 = vmatpush2.msra.mxu0 0.0
        %414 = vmatprep.subr.mxu0 0.0
        %415 = vmatpush2.msra.mxu0 0.0
        %416 = vmatprep.subr.mxu0 0.0
        %417 = vmatpush2.msra.mxu0 0.0
        %418 = vmatprep.subr.mxu0 0.0
        %419 = vmatpush2.msra.mxu0 0.0
        %420 = vmatprep.subr.mxu0 0.0
        %421 = vmatpush2.msra.mxu0 0.0
        %422 = vmatprep.subr.mxu0 0.0
        %423 = vmatpush2.msra.mxu0 0.0
        %424 = vmatprep.subr.mxu0 0.0
        %425 = vmatpush2.msra.mxu0 0.0
        %426 = vmatprep.subr.mxu0 0.0
        %427 = vmatpush2.msra.mxu0 0.0
        %428 = vmatprep.subr.mxu0 0.0
        %429 = vmatpush2.msra.mxu0 0.0
        %430 = vmatprep.subr.mxu0 0.0
        %431 = vmatpush2.msra.mxu0 0.0
        %432 = vmatprep.subr.mxu0 0.0
        %433 = vmatpush2.msra.mxu0 0.0
        %434 = vmatprep.subr.mxu0 0.0
        %435 = vmatpush2.msra.mxu0 0.0
        %436 = vmatprep.subr.mxu0 0.0
        %437 = vmatpush2.msra.mxu0 0.0
        %438 = vmatprep.subr.mxu0 0.0
        %439 = vmatpush2.msra.mxu0 0.0
        %440 = vmatprep.mubr.f32.mxu0 0.0
        %441 = vmatmul.mubr.f32.gmra.mxu0 %v374
        %v442 = vpop.f32.mrf.mxu0
        %v443 = vadd.f32 %v371, %v442
        %v444 = vpop.f32.mrf.mxu0
        %445 = vdwg.mxu0
        %s446 = scalar_lea.vmem %s266, 8 [#allocation8]
        %447 = vst.msk [vmem:[%s446] sm:$0xff] %vm283, %v443
        %s448 = sand.u32 %s136, 1
        %s449 = scalar_lea.sflag [#allocation4], %s448
        %s450 = sand.u32 %s136, 1
        %s451 = smul.addr %s450, 16
        %s452 = scalar_lea.vmem [#allocation8], %s451
        // Predicated region
        $region45: #{tpu_custom_call.1} parent=31 // pred_check
          %p453 = pneg %p146
        $region46: #{tpu_custom_call.1} parent=31 // pred_check_branch
          %455 = sbr.rel (%p453) target = $region48
        $region47: #{tpu_custom_call.1} parent=31 // pred_region
          %s456 = smul.u32 2, %s26
          %s458 = ssub.s32 256, 256
          %459 = vsyncadd %s449, %s458
          %s460 = sadd.s32 %s27, %s28
          %s461 = sadd.s32 %s460, %s456
          %s462 = smul.addr %s461, 128
          %s463 = scalar_lea.hbm %s3, %s462
          %s464 = sshll.u32 %s452, 4
          %s465 = int_to_ptr.vmem [resolvable:$true] %s464
          %470 = dma.vmem_to_hbm [thread:$0]  %s465, 256, %s463, %s449, 128, 128, 8
        $region48: #{tpu_custom_call.1} parent=31 // pred_fallthru
          _
      $region32: #{tpu_custom_call.1} parent=5 // pred_fallthru
        _
      %p471 = scmp.le.s32.totalorder 2, %s16
      // Predicated region
      $region49: #{tpu_custom_call.1} parent=5 // pred_check
        %p472 = pneg %p471
      $region50: #{tpu_custom_call.1} parent=5 // pred_check_branch
        %474 = sbr.rel (%p472) target = $region52
      $region51: #{tpu_custom_call.1} parent=5 // pred_region
        %s475 = ssub.s32 %s16, 2
        // Predicated region
        $region53: #{tpu_custom_call.1} parent=51 // pred_check
          %p476 = pneg %p152
        $region54: #{tpu_custom_call.1} parent=51 // pred_check_branch
          %478 = sbr.rel (%p476) target = $region56
        $region55: #{tpu_custom_call.1} parent=51 // pred_region
          %s479 = sand.u32 %s137, 1
          %s480 = scalar_lea.sflag [#allocation4], %s479
          %s481 = sand.u32 %s137, 1
          %s482 = smul.addr %s481, 16
          %s483 = scalar_lea.vmem [#allocation8], %s482
          %484 = dma.done %s480, 256
        $region56: #{tpu_custom_call.1} parent=51 // pred_fallthru
          _
      $region52: #{tpu_custom_call.1} parent=5 // pred_fallthru
        _
    $region6: #{tpu_custom_call.1} parent=1 // loop_footer
      %s20 = sadd.s32 1, %s16
    $region7: #{tpu_custom_call.1} parent=1 // loop_footer_branch
      %15 = sbr.rel target = $region3
    $region8: #{tpu_custom_call.1} parent=1 // loop_exit
      _
    %485 = vsyncpa [#allocation3], 1
    %s486 = scalar_lea.sflag [#allocation3], 1
    %487 = vsyncpa %s486, 1
    %488 = vsyncpa [#allocation6], 1
    %489 = vsyncpa [#allocation4], 1
    %s490 = scalar_lea.sflag [#allocation4], 1
    %491 = vsyncpa %s490, 1

// kernel: tpu_custom_call.1
$region0: #{tpu_custom_call.1}
  #allocation0 [shape = 'u32[]', space=smem, size = 0x4, offset = 0x4, fixed_abs, tag = 'smem constant byte address 0x4 - core index']
  #allocation1 [shape = 'u32[144,128]{1,0:T(1,128)}', space=vmem, size = 0x12000, scoped, tag = 'internal scratch']
  %s0 = inlined_call_operand.hbm [shape: f32[4,8,32], index: 0, kind: input, shape index: {}]
  %s1 = inlined_call_operand.hbm [shape: f32[4,32,32], index: 1, kind: input, shape index: {}]
  %s2 = inlined_call_operand.hbm [shape: f32[4,1,32], index: 2, kind: input, shape index: {}]
  %s3 = inlined_call_operand.hbm [shape: f32[4,8,32], index: 3, kind: output, shape index: {}]
  %s4 = sld [smem:[#allocation0]]
  $region57: #{tpu_custom_call.1} parent=0
    _
  %s6 = ssub.s32 1, %s4
  %s7 = scalar_select 0, %s6, %s4
  $region1: #{tpu_custom_call.1} parent=0
    #allocation2 [shape = 'u8[16384]{0}', space=vmem, size = 0x4000, scoped, tag = 'input window, operand 0']
    #allocation3 [shape = 's32[2]{0}', space=sflag, size = 0x8, scoped, tag = 'scoped memory for tpu_custom_call.1']
    #allocation4 [shape = 's32[2]{0}', space=sflag, size = 0x8, scoped, tag = 'scoped memory for tpu_custom_call.1']
    #allocation5 [shape = 'u8[65536]{0}', space=vmem, size = 0x10000, scoped, tag = 'input window, operand 1']
    #allocation6 [shape = 's32[2]{0}', space=sflag, size = 0x8, scoped, tag = 'scoped memory for tpu_custom_call.1']
    #allocation7 [shape = 'u8[2048]{0}', space=vmem, size = 0x800, scoped, tag = 'input window, operand 2']
    #allocation8 [shape = 'u8[16384]{0}', space=vmem, size = 0x4000, scoped, tag = 'output window, operand 0']
    %8 = vsyncpa [#allocation3], 0
    %s9 = scalar_lea.sflag [#allocation3], 1
    %10 = vsyncpa %s9, 0
    %11 = vsyncpa [#allocation6], 0
    %s12 = scalar_lea.sflag [#allocation6], 1
    %13 = vsyncpa %s12, 0
    %14 = vsyncpa [#allocation4], 0
    %s15 = scalar_lea.sflag [#allocation4], 1
    %16 = vsyncpa %s15, 0
    loop: start=0, step=1, limit=4
    $region2: #{tpu_custom_call.1} parent=1 // loop_pre_header
      _
    $region3: #{tpu_custom_call.1} parent=1 // loop_header
      %s18 = sphi 0, %s22
      %p19 = scmp.ge.s32.totalorder %s18, 4
      %s25 = sphi 0, %s44
      %s26 = sphi 0, %s40
      %s27 = sphi 0, %s36
      %s28 = sphi 0, %s25
      %s29 = sphi 0, %s26
      %s30 = sphi 0, %s27
      %s31 = sphi 0, %s28
      %s32 = sphi 0, %s29
      %s33 = sphi 0, %s30
      %s49 = sphi 0, %s51
      %s52 = sphi 0, %s49
      %s53 = sphi 0, %s52
      %s69 = sphi 0, %s53
      %s77 = sphi 0, %s79
      %s80 = sphi 0, %s77
      %s81 = sphi 0, %s80
      %s97 = sphi 0, %s81
      %s105 = sphi 0, %s107
      %s108 = sphi 0, %s105
      %s109 = sphi 0, %s108
      %s125 = sphi 0, %s109
      %s135 = sphi 0, %s137
      %s138 = sphi 0, %s135
      %s139 = sphi 0, %s138
      %s155 = sphi 0, %s139
    $region4: #{tpu_custom_call.1} parent=1 // loop_header_branch
      %21 = sbr.rel (%p19) target = $region8
    $region5: #{tpu_custom_call.1} parent=1 // loop_body
      %s23 = ssub.s32 %s18, 1
      %s24 = ssub.s32 %s18, 2
      %s34 = sadd.s32 1, %s27
      %p35 = scmp.ge.s32.totalorder %s34, 1
      %s36 = scalar_select %p35, 0, %s34
      %s37 = sadd.s32 1, %s26
      %s38 = scalar_select %p35, %s37, %s26
      %p39 = scmp.ge.s32.totalorder %s38, 1
      %s40 = scalar_select %p39, 0, %s38
      %s41 = sadd.s32 1, %s25
      %s42 = scalar_select %p39, %s41, %s25
      %p43 = scmp.ge.s32.totalorder %s42, 2
      %s44 = scalar_select %p43, 0, %s42
      %s45 = ssub.s32 %s25, %s44
      %s46 = ssub.s32 %s27, %s36
      %s47 = sor.u32 %s45, %s46
      %p48 = scmp.eq.s32.totalorder %s47, 0
      %s50 = sadd.s32 %s49, 1
      %s51 = scalar_select %p48, %s49, %s50
      %p54 = pneg %p48
      %p55 = scmp.eq.s32.totalorder %s18, 1
      %p56 = por %p54, %p55
      %p57 = scmp.ne.s32.totalorder %s49, %s52
      %p58 = scmp.eq.s32.totalorder %s18, 0
      %p59 = por %p57, %p58
      %p60 = scmp.ne.s32.totalorder %s49, %s52
      %p61 = scmp.eq.s32.totalorder %s23, 1
      %p62 = por %p60, %p61
      %p63 = scmp.ne.s32.totalorder %s52, %s53
      %p64 = scmp.eq.s32.totalorder %s23, 0
      %p65 = por %p63, %p64
      %p66 = scmp.ne.s32.totalorder %s52, %s53
      %p67 = scmp.eq.s32.totalorder %s24, 1
      %p68 = por %p66, %p67
      %p70 = scmp.ne.s32.totalorder %s53, %s69
      %p71 = scmp.eq.s32.totalorder %s24, 0
      %p72 = por %p70, %p71
      %s73 = ssub.s32 %s25, %s44
      %s74 = ssub.s32 %s26, %s40
      %s75 = sor.u32 %s73, %s74
      %p76 = scmp.eq.s32.totalorder %s75, 0
      %s78 = sadd.s32 %s77, 1
      %s79 = scalar_select %p76, %s77, %s78
      %p82 = pneg %p76
      %p83 = scmp.eq.s32.totalorder %s18, 1
      %p84 = por %p82, %p83
      %p85 = scmp.ne.s32.totalorder %s77, %s80
      %p86 = scmp.eq.s32.totalorder %s18, 0
      %p87 = por %p85, %p86
      %p88 = scmp.ne.s32.totalorder %s77, %s80
      %p89 = scmp.eq.s32.totalorder %s23, 1
      %p90 = por %p88, %p89
      %p91 = scmp.ne.s32.totalorder %s80, %s81
      %p92 = scmp.eq.s32.totalorder %s23, 0
      %p93 = por %p91, %p92
      %p94 = scmp.ne.s32.totalorder %s80, %s81
      %p95 = scmp.eq.s32.totalorder %s24, 1
      %p96 = por %p94, %p95
      %p98 = scmp.ne.s32.totalorder %s81, %s97
      %p99 = scmp.eq.s32.totalorder %s24, 0
      %p100 = por %p98, %p99
      %s101 = ssub.s32 %s25, %s44
      %s102 = ssub.s32 %s26, %s40
      %s103 = sor.u32 %s101, %s102
      %p104 = scmp.eq.s32.totalorder %s103, 0
      %s106 = sadd.s32 %s105, 1
      %s107 = scalar_select %p104, %s105, %s106
      %p110 = pneg %p104
      %p111 = scmp.eq.s32.totalorder %s18, 1
      %p112 = por %p110, %p111
      %p113 = scmp.ne.s32.totalorder %s105, %s108
      %p114 = scmp.eq.s32.totalorder %s18, 0
      %p115 = por %p113, %p114
      %p116 = scmp.ne.s32.totalorder %s105, %s108
      %p117 = scmp.eq.s32.totalorder %s23, 1
      %p118 = por %p116, %p117
      %p119 = scmp.ne.s32.totalorder %s108, %s109
      %p120 = scmp.eq.s32.totalorder %s23, 0
      %p121 = por %p119, %p120
      %p122 = scmp.ne.s32.totalorder %s108, %s109
      %p123 = scmp.eq.s32.totalorder %s24, 1
      %p124 = por %p122, %p123
      %p126 = scmp.ne.s32.totalorder %s109, %s125
      %p127 = scmp.eq.s32.totalorder %s24, 0
      %p128 = por %p126, %p127
      %s129 = ssub.s32 %s25, %s44
      %s130 = ssub.s32 %s27, %s36
      %s131 = sor.u32 %s129, %s130
      %s132 = ssub.s32 %s26, %s40
      %s133 = sor.u32 %s131, %s132
      %p134 = scmp.eq.s32.totalorder %s133, 0
      %s136 = sadd.s32 %s135, 1
      %s137 = scalar_select %p134, %s135, %s136
      %p140 = pneg %p134
      %p141 = scmp.eq.s32.totalorder %s18, 1
      %p142 = por %p140, %p141
      %p143 = scmp.ne.s32.totalorder %s135, %s138
      %p144 = scmp.eq.s32.totalorder %s18, 0
      %p145 = por %p143, %p144
      %p146 = scmp.ne.s32.totalorder %s135, %s138
      %p147 = scmp.eq.s32.totalorder %s23, 1
      %p148 = por %p146, %p147
      %p149 = scmp.ne.s32.totalorder %s138, %s139
      %p150 = scmp.eq.s32.totalorder %s23, 0
      %p151 = por %p149, %p150
      %p152 = scmp.ne.s32.totalorder %s138, %s139
      %p153 = scmp.eq.s32.totalorder %s24, 1
      %p154 = por %p152, %p153
      %p156 = scmp.ne.s32.totalorder %s139, %s155
      %p157 = scmp.eq.s32.totalorder %s24, 0
      %p158 = por %p156, %p157
      %p159 = scmp.le.s32.totalorder 1, %s18
      %p160 = scmp.lt.s32.totalorder %s18, 3
      %p161 = pnand %p159, %p160
      %p162 = pneg %p161
      // Predicated region
      $region9: #{tpu_custom_call.1} parent=5 // pred_check
        _
      $region10: #{tpu_custom_call.1} parent=5 // pred_check_branch
        %164 = sbr.rel (%p161) target = $region12
      $region11: #{tpu_custom_call.1} parent=5 // pred_region
        %s165 = ssub.s32 %s18, 1
      $region12: #{tpu_custom_call.1} parent=5 // pred_fallthru
        _
      %p166 = scmp.lt.s32.totalorder %s18, 2
      // Predicated region
      $region13: #{tpu_custom_call.1} parent=5 // pred_check
        %p167 = pneg %p166
      $region14: #{tpu_custom_call.1} parent=5 // pred_check_branch
        %169 = sbr.rel (%p167) target = $region16
      $region15: #{tpu_custom_call.1} parent=5 // pred_region
        // Predicated region
        $region17: #{tpu_custom_call.1} parent=15 // pred_check
          %p170 = pneg %p59
        $region18: #{tpu_custom_call.1} parent=15 // pred_check_branch
          %172 = sbr.rel (%p170) target = $region20
        $region19: #{tpu_custom_call.1} parent=15 // pred_region
          %s173 = sand.u32 %s49, 1
          %s174 = scalar_lea.sflag [#allocation3], %s173
          %s175 = sand.u32 %s49, 1
          %s176 = smul.addr %s175, 16
          %s177 = scalar_lea.vmem [#allocation2], %s176
          %s178 = smul.u32 2, %s25
          %s180 = ssub.s32 256, 256
          %181 = vsyncadd %s174, %s180
          %s182 = sadd.s32 %s27, %s178
          %s183 = smul.addr %s182, 128
          %s184 = scalar_lea.hbm %s0, %s183
          %s185 = sshll.u32 %s177, 4
          %s186 = int_to_ptr.vmem [resolvable:$true] %s185
          %191 = dma.hbm_to_vmem [thread:$0]  %s184, 256, %s186, %s174, 128, 128, 8
        $region20: #{tpu_custom_call.1} parent=15 // pred_fallthru
          _
        // Predicated region
        $region21: #{tpu_custom_call.1} parent=15 // pred_check
          %p192 = pneg %p87
        $region22: #{tpu_custom_call.1} parent=15 // pred_check_branch
          %194 = sbr.rel (%p192) target = $region24
        $region23: #{tpu_custom_call.1} parent=15 // pred_region
          %s195 = sand.u32 %s18, 1
          %s196 = scalar_lea.sflag [#allocation6], %s195
          %s197 = sand.u32 %s77, 1
          %s198 = smul.addr %s197, 64
          %s199 = scalar_lea.vmem [#allocation5], %s198
          %s200 = smul.u32 2, %s25
          %s202 = ssub.s32 1024, 1024
          %203 = vsyncadd %s196, %s202
          %s204 = smul.addr %s200, 4
          %s205 = sadd.s32 %s26, %s204
          %s206 = smul.addr %s205, 128
          %s207 = scalar_lea.hbm %s1, %s206
          %s208 = sshll.u32 %s199, 4
          %s209 = int_to_ptr.vmem [resolvable:$true] %s208
          %214 = dma.hbm_to_vmem [thread:$0]  %s207, 1024, %s209, %s196, 128, 128, 8
        $region24: #{tpu_custom_call.1} parent=15 // pred_fallthru
          _
        // Predicated region
        $region25: #{tpu_custom_call.1} parent=15 // pred_check
          %p215 = pneg %p115
        $region26: #{tpu_custom_call.1} parent=15 // pred_check_branch
          %217 = sbr.rel (%p215) target = $region28
        $region27: #{tpu_custom_call.1} parent=15 // pred_region
          %s218 = sand.u32 %s18, 1
          %s219 = scalar_lea.sflag [#allocation6], %s218
          %s220 = sand.u32 %s105, 1
          %s221 = smul.addr %s220, 2
          %s222 = scalar_lea.vmem [#allocation7], %s221
          %s223 = smul.u32 2, %s25
          %s225 = ssub.s32 32, 32
          %226 = vsyncadd %s219, %s225
          %s227 = sadd.s32 %s26, %s223
          %s228 = smul.addr %s227, 16
          %s229 = scalar_lea.hbm %s2, %s228
          %s230 = sshll.u32 %s222, 4
          %s231 = int_to_ptr.vmem [resolvable:$true] %s230
          %236 = dma.hbm_to_vmem [thread:$0]  %s229, 32, %s231, %s219, 16, 16, 1
        $region28: #{tpu_custom_call.1} parent=15 // pred_fallthru
          _
      $region16: #{tpu_custom_call.1} parent=5 // pred_fallthru
        _
      %p237 = scmp.le.s32.totalorder 1, %s18
      %p238 = scmp.lt.s32.totalorder %s18, 3
      %p239 = pnand %p237, %p238
      %p240 = pneg %p239
      // Predicated region
      $region29: #{tpu_custom_call.1} parent=5 // pred_check
        _
      $region30: #{tpu_custom_call.1} parent=5 // pred_check_branch
        %242 = sbr.rel (%p239) target = $region32
      $region31: #{tpu_custom_call.1} parent=5 // pred_region
        %s243 = ssub.s32 %s18, 1
        %s244 = sand.u32 %s52, 1
        %s245 = scalar_lea.sflag [#allocation3], %s244
        %s246 = sand.u32 %s52, 1
        %s247 = smul.addr %s246, 16
        %s248 = scalar_lea.vmem [#allocation2], %s247
        // Predicated region
        $region33: #{tpu_custom_call.1} parent=31 // pred_check
          %p249 = pneg %p65
        $region34: #{tpu_custom_call.1} parent=31 // pred_check_branch
          %251 = sbr.rel (%p249) target = $region36
        $region35: #{tpu_custom_call.1} parent=31 // pred_region
          %252 = dma.done %s245, 256
        $region36: #{tpu_custom_call.1} parent=31 // pred_fallthru
          _
        %s253 = sand.u32 %s23, 1
        %s254 = scalar_lea.sflag [#allocation6], %s253
        %s255 = sand.u32 %s80, 1
        %s256 = smul.addr %s255, 64
        %s257 = scalar_lea.vmem [#allocation5], %s256
        // Predicated region
        $region37: #{tpu_custom_call.1} parent=31 // pred_check
          %p258 = pneg %p93
        $region38: #{tpu_custom_call.1} parent=31 // pred_check_branch
          %260 = sbr.rel (%p258) target = $region40
        $region39: #{tpu_custom_call.1} parent=31 // pred_region
          %261 = dma.done %s254, 1024
        $region40: #{tpu_custom_call.1} parent=31 // pred_fallthru
          _
        %s262 = sand.u32 %s23, 1
        %s263 = scalar_lea.sflag [#allocation6], %s262
        %s264 = sand.u32 %s108, 1
        %s265 = smul.addr %s264, 2
        %s266 = scalar_lea.vmem [#allocation7], %s265
        // Predicated region
        $region41: #{tpu_custom_call.1} parent=31 // pred_check
          %p267 = pneg %p121
        $region42: #{tpu_custom_call.1} parent=31 // pred_check_branch
          %269 = sbr.rel (%p267) target = $region44
        $region43: #{tpu_custom_call.1} parent=31 // pred_region
          %270 = dma.done %s263, 32
        $region44: #{tpu_custom_call.1} parent=31 // pred_fallthru
          _
        %s271 = sand.u32 %s52, 1
        %s272 = scalar_lea.sflag [#allocation3], %s271
        %s273 = sand.u32 %s52, 1
        %s274 = smul.addr %s273, 16
        %s275 = scalar_lea.vmem [#allocation2], %s274
        %p276 = pneg %p65
        %p277 = pneg %p62
        %s278 = sand.u32 %s23, 1
        %s279 = scalar_lea.sflag [#allocation6], %s278
        %s280 = sand.u32 %s80, 1
        %s281 = smul.addr %s280, 64
        %s282 = scalar_lea.vmem [#allocation5], %s281
        %p283 = pneg %p93
        %p284 = pneg %p90
        %s285 = sand.u32 %s23, 1
        %s286 = scalar_lea.sflag [#allocation6], %s285
        %s287 = sand.u32 %s108, 1
        %s288 = smul.addr %s287, 2
        %s289 = scalar_lea.vmem [#allocation7], %s288
        %p290 = pneg %p121
        %p291 = pneg %p118
        %p292 = pneg %p151
        %p293 = pneg %p148
        %s294 = sand.u32 %s138, 1
        %s295 = scalar_lea.sflag [#allocation4], %s294
        %s296 = sand.u32 %s138, 1
        %s297 = smul.addr %s296, 16
        %s298 = scalar_lea.vmem [#allocation8], %s297
        %s299 = smul.u32 2, %s28
        %s300 = smul.u32 2, %s28
        %s301 = smul.u32 2, %s28
        %s302 = smul.u32 2, %s28
        %v303 = vld [vmem:[%s248] sm:$0xff]
        %v304 = vld [vmem:[%s257] sm:$0xff]
        %v305 = vld [vmem:[%s257 + $0x8] sm:$0xff]
        %v306 = vld [vmem:[%s257 + $0x10] sm:$0xff]
        %v307 = vld [vmem:[%s257 + $0x18] sm:$0xff]
        %v308 = vld [vmem:[%s266] sm:$0x1]
        %v310 = vlaneseq
        %v311 = vshrl.u32 %v310, 7
        %v312 = vsub.s32 0, %v311
        %v313 = vrot.slane %v308, %v312
        %vm315 = vcmask 261120
        %v317 = vsel %vm315, %v303, 0
        %319 = vmatprep.subr.mxu0 0.0
        %320 = vmatpush1.msra.mxu0 0.0
        %321 = vmatprep.subr.mxu0 0.0
        %322 = vmatpush1.msra.mxu0 0.0
        %323 = vmatprep.subr.mxu0 0.0
        %324 = vmatpush1.msra.mxu0 0.0
        %325 = vmatprep.subr.mxu0 0.0
        %326 = vmatpush1.msra.mxu0 0.0
        %327 = vmatprep.subr.mxu0 0.0
        %328 = vmatpush1.msra.mxu0 0.0
        %329 = vmatprep.subr.mxu0 0.0
        %330 = vmatpush1.msra.mxu0 0.0
        %331 = vmatprep.subr.mxu0 0.0
        %332 = vmatpush1.msra.mxu0 0.0
        %333 = vmatprep.subr.mxu0 0.0
        %334 = vmatpush1.msra.mxu0 0.0
        %335 = vmatprep.subr.mxu0 0.0
        %336 = vmatpush1.msra.mxu0 0.0
        %337 = vmatprep.subr.mxu0 0.0
        %338 = vmatpush1.msra.mxu0 0.0
        %339 = vmatprep.subr.mxu0 0.0
        %340 = vmatpush1.msra.mxu0 0.0
        %341 = vmatprep.subr.mxu0 0.0
        %342 = vmatpush1.msra.mxu0 0.0
        %343 = vmatprep.subr.mxu0 0.0
        %344 = vmatpush1.msra.mxu0 %v307
        %345 = vmatprep.subr.mxu0 0.0
        %346 = vmatpush1.msra.mxu0 %v306
        %347 = vmatprep.subr.mxu0 0.0
        %348 = vmatpush1.msra.mxu0 %v305
        %349 = vmatprep.subr.mxu0 0.0
        %350 = vmatpush1.msra.mxu0 %v304
        %351 = vmatprep.subr.mxu0 0.0
        %352 = vmatpush2.msra.mxu0 0.0
        %353 = vmatprep.subr.mxu0 0.0
        %354 = vmatpush2.msra.mxu0 0.0
        %355 = vmatprep.subr.mxu0 0.0
        %356 = vmatpush2.msra.mxu0 0.0
        %357 = vmatprep.subr.mxu0 0.0
        %358 = vmatpush2.msra.mxu0 0.0
        %359 = vmatprep.subr.mxu0 0.0
        %360 = vmatpush2.msra.mxu0 0.0
        %361 = vmatprep.subr.mxu0 0.0
        %362 = vmatpush2.msra.mxu0 0.0
        %363 = vmatprep.subr.mxu0 0.0
        %364 = vmatpush2.msra.mxu0 0.0
        %365 = vmatprep.subr.mxu0 0.0
        %366 = vmatpush2.msra.mxu0 0.0
        %367 = vmatprep.subr.mxu0 0.0
        %368 = vmatpush2.msra.mxu0 0.0
        %369 = vmatprep.subr.mxu0 0.0
        %370 = vmatpush2.msra.mxu0 0.0
        %371 = vmatprep.subr.mxu0 0.0
        %372 = vmatpush2.msra.mxu0 0.0
        %373 = vmatprep.subr.mxu0 0.0
        %374 = vmatpush2.msra.mxu0 0.0
        %375 = vmatprep.subr.mxu0 0.0
        %376 = vmatpush2.msra.mxu0 0.0
        %377 = vmatprep.subr.mxu0 0.0
        %378 = vmatpush2.msra.mxu0 0.0
        %379 = vmatprep.subr.mxu0 0.0
        %380 = vmatpush2.msra.mxu0 0.0
        %381 = vmatprep.subr.mxu0 0.0
        %382 = vmatpush2.msra.mxu0 0.0
        %383 = vmatprep.mubr.f32.mxu0 0.0
        %384 = vmatmul.mubr.f32.gmra.mxu0 %v317
        %v385 = vpop.f32.mrf.mxu0
        %v386 = vadd.f32 %v313, %v385
        %v387 = vpop.f32.mrf.mxu0
        %388 = vdwg.mxu0
        %389 = vst.msk [vmem:[%s298] sm:$0xff] %vm315, %v386
        %s390 = scalar_lea.vmem %s248, 8 [#allocation2]
        %v391 = vld [vmem:[%s390] sm:$0xff]
        %s392 = scalar_lea.vmem %s257, 32 [#allocation5]
        %v393 = vld [vmem:[%s392] sm:$0xff]
        %v394 = vld [vmem:[%s392 + $0x8] sm:$0xff]
        %v395 = vld [vmem:[%s392 + $0x10] sm:$0xff]
        %v396 = vld [vmem:[%s392 + $0x18] sm:$0xff]
        %s397 = scalar_lea.vmem %s266, 1 [#allocation7]
        %v398 = vld [vmem:[%s397] sm:$0x1]
        %v400 = vlaneseq
        %v401 = vshrl.u32 %v400, 7
        %v402 = vsub.s32 0, %v401
        %v403 = vrot.slane %v398, %v402
        %v406 = vsel %vm315, %v391, 0
        %408 = vmatprep.subr.mxu0 0.0
        %409 = vmatpush1.msra.mxu0 0.0
        %410 = vmatprep.subr.mxu0 0.0
        %411 = vmatpush1.msra.mxu0 0.0
        %412 = vmatprep.subr.mxu0 0.0
        %413 = vmatpush1.msra.mxu0 0.0
        %414 = vmatprep.subr.mxu0 0.0
        %415 = vmatpush1.msra.mxu0 0.0
        %416 = vmatprep.subr.mxu0 0.0
        %417 = vmatpush1.msra.mxu0 0.0
        %418 = vmatprep.subr.mxu0 0.0
        %419 = vmatpush1.msra.mxu0 0.0
        %420 = vmatprep.subr.mxu0 0.0
        %421 = vmatpush1.msra.mxu0 0.0
        %422 = vmatprep.subr.mxu0 0.0
        %423 = vmatpush1.msra.mxu0 0.0
        %424 = vmatprep.subr.mxu0 0.0
        %425 = vmatpush1.msra.mxu0 0.0
        %426 = vmatprep.subr.mxu0 0.0
        %427 = vmatpush1.msra.mxu0 0.0
        %428 = vmatprep.subr.mxu0 0.0
        %429 = vmatpush1.msra.mxu0 0.0
        %430 = vmatprep.subr.mxu0 0.0
        %431 = vmatpush1.msra.mxu0 0.0
        %432 = vmatprep.subr.mxu0 0.0
        %433 = vmatpush1.msra.mxu0 %v396
        %434 = vmatprep.subr.mxu0 0.0
        %435 = vmatpush1.msra.mxu0 %v395
        %436 = vmatprep.subr.mxu0 0.0
        %437 = vmatpush1.msra.mxu0 %v394
        %438 = vmatprep.subr.mxu0 0.0
        %439 = vmatpush1.msra.mxu0 %v393
        %440 = vmatprep.subr.mxu0 0.0
        %441 = vmatpush2.msra.mxu0 0.0
        %442 = vmatprep.subr.mxu0 0.0
        %443 = vmatpush2.msra.mxu0 0.0
        %444 = vmatprep.subr.mxu0 0.0
        %445 = vmatpush2.msra.mxu0 0.0
        %446 = vmatprep.subr.mxu0 0.0
        %447 = vmatpush2.msra.mxu0 0.0
        %448 = vmatprep.subr.mxu0 0.0
        %449 = vmatpush2.msra.mxu0 0.0
        %450 = vmatprep.subr.mxu0 0.0
        %451 = vmatpush2.msra.mxu0 0.0
        %452 = vmatprep.subr.mxu0 0.0
        %453 = vmatpush2.msra.mxu0 0.0
        %454 = vmatprep.subr.mxu0 0.0
        %455 = vmatpush2.msra.mxu0 0.0
        %456 = vmatprep.subr.mxu0 0.0
        %457 = vmatpush2.msra.mxu0 0.0
        %458 = vmatprep.subr.mxu0 0.0
        %459 = vmatpush2.msra.mxu0 0.0
        %460 = vmatprep.subr.mxu0 0.0
        %461 = vmatpush2.msra.mxu0 0.0
        %462 = vmatprep.subr.mxu0 0.0
        %463 = vmatpush2.msra.mxu0 0.0
        %464 = vmatprep.subr.mxu0 0.0
        %465 = vmatpush2.msra.mxu0 0.0
        %466 = vmatprep.subr.mxu0 0.0
        %467 = vmatpush2.msra.mxu0 0.0
        %468 = vmatprep.subr.mxu0 0.0
        %469 = vmatpush2.msra.mxu0 0.0
        %470 = vmatprep.subr.mxu0 0.0
        %471 = vmatpush2.msra.mxu0 0.0
        %472 = vmatprep.mubr.f32.mxu0 0.0
        %473 = vmatmul.mubr.f32.gmra.mxu0 %v406
        %v474 = vpop.f32.mrf.mxu0
        %v475 = vadd.f32 %v403, %v474
        %v476 = vpop.f32.mrf.mxu0
        %477 = vdwg.mxu0
        %s478 = scalar_lea.vmem %s298, 8 [#allocation8]
        %479 = vst.msk [vmem:[%s478] sm:$0xff] %vm315, %v475
        %s480 = sand.u32 %s138, 1
        %s481 = scalar_lea.sflag [#allocation4], %s480
        %s482 = sand.u32 %s138, 1
        %s483 = smul.addr %s482, 16
        %s484 = scalar_lea.vmem [#allocation8], %s483
        // Predicated region
        $region45: #{tpu_custom_call.1} parent=31 // pred_check
          %p485 = pneg %p148
        $region46: #{tpu_custom_call.1} parent=31 // pred_check_branch
          %487 = sbr.rel (%p485) target = $region48
        $region47: #{tpu_custom_call.1} parent=31 // pred_region
          %s488 = smul.u32 2, %s28
          %s490 = ssub.s32 256, 256
          %491 = vsyncadd %s481, %s490
          %s492 = sadd.s32 %s29, %s30
          %s493 = sadd.s32 %s492, %s488
          %s494 = smul.addr %s493, 128
          %s495 = scalar_lea.hbm %s3, %s494
          %s496 = sshll.u32 %s484, 4
          %s497 = int_to_ptr.vmem [resolvable:$true] %s496
          %502 = dma.vmem_to_hbm [thread:$0]  %s497, 256, %s495, %s481, 128, 128, 8
        $region48: #{tpu_custom_call.1} parent=31 // pred_fallthru
          _
      $region32: #{tpu_custom_call.1} parent=5 // pred_fallthru
        _
      %p503 = scmp.le.s32.totalorder 2, %s18
      // Predicated region
      $region49: #{tpu_custom_call.1} parent=5 // pred_check
        %p504 = pneg %p503
      $region50: #{tpu_custom_call.1} parent=5 // pred_check_branch
        %506 = sbr.rel (%p504) target = $region52
      $region51: #{tpu_custom_call.1} parent=5 // pred_region
        %s507 = ssub.s32 %s18, 2
        // Predicated region
        $region53: #{tpu_custom_call.1} parent=51 // pred_check
          %p508 = pneg %p154
        $region54: #{tpu_custom_call.1} parent=51 // pred_check_branch
          %510 = sbr.rel (%p508) target = $region56
        $region55: #{tpu_custom_call.1} parent=51 // pred_region
          %s511 = sand.u32 %s139, 1
          %s512 = scalar_lea.sflag [#allocation4], %s511
          %s513 = sand.u32 %s139, 1
          %s514 = smul.addr %s513, 16
          %s515 = scalar_lea.vmem [#allocation8], %s514
          %516 = dma.done %s512, 256
        $region56: #{tpu_custom_call.1} parent=51 // pred_fallthru
          _
      $region52: #{tpu_custom_call.1} parent=5 // pred_fallthru
        _
    $region6: #{tpu_custom_call.1} parent=1 // loop_footer
      %s22 = sadd.s32 1, %s18
    $region7: #{tpu_custom_call.1} parent=1 // loop_footer_branch
      %17 = sbr.rel target = $region3
    $region8: #{tpu_custom_call.1} parent=1 // loop_exit
      _
    %517 = vsyncpa [#allocation3], 1
    %s518 = scalar_lea.sflag [#allocation3], 1
    %519 = vsyncpa %s518, 1
    %520 = vsyncpa [#allocation6], 1
    %s521 = scalar_lea.sflag [#allocation6], 1
    %522 = vsyncpa %s521, 1
    %523 = vsyncpa [#allocation4], 1
    %s524 = scalar_lea.sflag [#allocation4], 1
    %525 = vsyncpa %s524, 1

</llo_original>
